<compile_context>
chip_gen: v5e
topology: v5e:2x2
jax: 0.10.0
libtpu: 0.0.40
codegen_flags: <defaults>
</compile_context>

<pallas_src>
import jax
import jax.numpy as jnp
from jax.experimental import pallas as pl
from jax.experimental.pallas import tpu as pltpu

_LANES = 128
_SUB = 8                     # f32 sublane granularity; accumulator is (8, 128)
_MAX_BLOCK_ROWS = 4096       # 4096 x 128 f32 = 2 MiB per input per pipeline buffer
_MIN_SPLIT_ROWS = 512        # split across 2 TCs once each side has >= this many rows


def _round_up(x, m):
    return ((x + m - 1) // m) * m


def _sublane_multiple(dtype):
    # Packed sub-32-bit dtypes need (16,128)/(32,128) tile granularity on the
    # second-minor dim.
    return max(_SUB, 32 // jnp.dtype(dtype).itemsize)


def _make_kernel(block_rows, blocks_per_split, rows_valid, num_blocks_total):
    """Builds the partial-sum kernel for a fixed (static) tiling."""
    # Blocks with index >= first_masked overhang the end of the (rows, 128)
    # array and must mask their invalid rows.
    first_masked = rows_valid // block_rows
    need_mask = first_masked < num_blocks_total
    groups = block_rows // _SUB

    def _fold(x):
        # Fold (block_rows, 128) -> (8, 128): layout-aligned cross-vreg VPU
        # adds (no XLU).  Cross-lane reduction is deferred to the wrapper.
        return jnp.sum(x.reshape(groups, _SUB, _LANES), axis=0)

    def kernel(p_ref, t_ref, acc_ref):
        c = pl.program_id(0)
        i = pl.program_id(1)

        # Output block (one per split) becomes resident when i resets to 0.
        @pl.when(i == 0)
        def _():
            acc_ref[...] = jnp.zeros_like(acc_ref)

        p_raw = p_ref[...].astype(jnp.float32)
        t_raw = t_ref[...].astype(jnp.float32)

        def accumulate(p, t):
            # PyTorch BCELoss clamps the log terms at -100.  Clamping BEFORE
            # the multiply means (p=0, t=0) elements contribute exactly 0 to
            # every sum (no inf*0 NaN), which is what the mask path relies on.
            log_p = jnp.maximum(jnp.log(p), -100.0)
            log_1mp = jnp.maximum(jnp.log(1.0 - p), -100.0)
            # Folded form of -(t*log_p + (1-t)*log_1mp): fewer VPU multiplies.
            bce = -(t * (log_p - log_1mp) + log_1mp)
            acc_ref[0, 0, :, :] += _fold(bce)
            acc_ref[0, 1, :, :] += _fold(p * t)
            acc_ref[0, 2, :, :] += _fold(p)
            acc_ref[0, 3, :, :] += _fold(t)

        if need_mask:
            blk = c * blocks_per_split + i

            @pl.when(blk < first_masked)
            def _():
                accumulate(p_raw, t_raw)

            @pl.when(blk >= first_masked)
            def _():
                # Mask p,t BEFORE the logs: garbage rows (beyond the array
                # end) become p=0,t=0, which contribute exactly 0 and can
                # never produce NaN.
                row0 = blk * block_rows
                local = jax.lax.broadcasted_iota(jnp.int32, (block_rows, 1), 0)
                valid = (local + row0) < rows_valid
                accumulate(jnp.where(valid, p_raw, 0.0),
                           jnp.where(valid, t_raw, 0.0))
        else:
            accumulate(p_raw, t_raw)

    return kernel


def bce_dice_loss(pred, target):
    """Pallas equivalent of BCEDiceLoss.forward(input, target)."""
    assert pred.shape == target.shape
    n = int(pred.size)

    flat_p = pred.reshape(-1)
    flat_t = target.reshape(-1)

    rows = pl.cdiv(n, _LANES)
    pad = rows * _LANES - n
    if pad:
        # Rare: only when n is not a multiple of 128.  Zero padding
        # contributes exactly 0 to all four sums (see kernel), so no extra
        # masking is needed for these elements.
        flat_p = jnp.pad(flat_p, (0, pad))
        flat_t = jnp.pad(flat_t, (0, pad))

    # Zero-copy bitcast reshape when pad == 0 (the common NCHW case).
    p2 = flat_p.reshape(rows, _LANES)
    t2 = flat_t.reshape(rows, _LANES)

    sub = max(_sublane_multiple(pred.dtype), _sublane_multiple(target.dtype))

    # Split across 2 TensorCores (v7x) whenever each half has enough rows;
    # block size is chosen per split afterwards.  On 1-TC parts the size-2
    # "parallel" axis degenerates to a serial loop with no overhead.
    num_splits = 2 if rows >= 2 * _MIN_SPLIT_ROWS else 1
    rows_per_split = pl.cdiv(rows, num_splits)
    blocks_per_split = pl.cdiv(rows_per_split, _MAX_BLOCK_ROWS)
    block_rows = _round_up(pl.cdiv(rows_per_split, blocks_per_split), sub)
    num_blocks_total = num_splits * blocks_per_split
    # For any realistic size (< ~268M elements) no block starts past the end
    # of the array; over-hanging rows of the final block are masked in-kernel.

    kernel = _make_kernel(block_rows, blocks_per_split, rows, num_blocks_total)

    in_map = lambda c, i: (c * blocks_per_split + i, 0)

    partials = pl.pallas_call(
        kernel,
        out_shape=jax.ShapeDtypeStruct(
            (num_splits, 4, _SUB, _LANES), jnp.float32
        ),
        grid_spec=pltpu.PrefetchScalarGridSpec(
            num_scalar_prefetch=0,
            grid=(num_splits, blocks_per_split),
            in_specs=[
                pl.BlockSpec((block_rows, _LANES), in_map),
                pl.BlockSpec((block_rows, _LANES), in_map),
            ],
            out_specs=pl.BlockSpec(
                (1, 4, _SUB, _LANES), lambda c, i: (c, 0, 0, 0)
            ),
        ),
        compiler_params=pltpu.CompilerParams(
            dimension_semantics=("parallel", "arbitrary"),
            # 2 inputs x 2 buffers x 2 MiB blocks + elementwise temporaries;
            # stays well under v7x's 64 MiB physical VMEM per TensorCore.
            vmem_limit_bytes=48 << 20,
        ),
    )(p2, t2)

    # Tiny final reduction + scalar math (num_splits * 4 * 8 * 128 floats).
    sums = jnp.sum(partials, axis=(0, 2, 3))  # [sum(bce), sum(p*t), sum(p), sum(t)]
    bce_mean = sums[0] / jnp.float32(n)
    dice_coef = (2.0 * sums[1] + 1.0) / (sums[2] + sums[3] + 1.0)
    return bce_mean + (1.0 - dice_coef)


def _reference(pred, target):
    p = pred.reshape(-1).astype(jnp.float32)
    t = target.reshape(-1).astype(jnp.float32)
    log_p = jnp.maximum(jnp.log(p), -100.0)
    log_1mp = jnp.maximum(jnp.log(1.0 - p), -100.0)
    bce = jnp.mean(-(t * log_p + (1.0 - t) * log_1mp))
    dice = (2.0 * jnp.sum(p * t) + 1.0) / (jnp.sum(p) + jnp.sum(t) + 1.0)
    return bce + (1.0 - dice)


if __name__ == "__main__":
    key = jax.random.PRNGKey(0)
    k1, k2 = jax.random.split(key)

    # NCHW-shaped inputs, as the PyTorch module would receive (probabilities).
    x = jax.nn.sigmoid(jax.random.normal(k1, (2, 4, 16, 16), dtype=jnp.float32))
    y = (jax.random.uniform(k2, (2, 4, 16, 16)) > 0.5).astype(jnp.float32)

    loss = bce_dice_loss(x, y)
    loss = jax.block_until_ready(loss)

    ref = _reference(x, y)
    assert jnp.allclose(loss, ref, rtol=1e-5, atol=1e-5), (loss, ref)

    print("KERNEL_OK")
</pallas_src>

<mosaic_0001>
module attributes {stable_mosaic.version = 11 : i64} {
  func.func @kernel(%arg0: i32, %arg1: i32, %arg2: memref<16x128xf32, #tpu.memory_space<vmem>>, %arg3: memref<16x128xf32, #tpu.memory_space<vmem>>, %arg4: memref<1x4x8x128xf32, #tpu.memory_space<vmem>>) attributes {dimension_semantics = [#tpu.dimension_semantics<parallel>, #tpu.dimension_semantics<arbitrary>], iteration_bounds = array<i64: 1, 1>, scalar_prefetch = 0 : i64, scratch_operands = 0 : i64, tpu.core_type = #tpu.core_type<tc>, window_params = [{transform_indices = @transform_0, window_bounds = array<i64: 16, 128>}, {transform_indices = @transform_1, window_bounds = array<i64: 16, 128>}, {transform_indices = @transform_2, window_bounds = array<i64: 1, 4, 8, 128>}]} {
    %c0_i32 = arith.constant 0 : i32
    %0 = arith.cmpi eq, %arg1, %c0_i32 : i32
    %1 = arith.extui %0 : i1 to i32
    %c0_i32_0 = arith.constant 0 : i32
    %2 = arith.cmpi ne, %1, %c0_i32_0 : i32
    scf.if %2 {
      %cst_40 = arith.constant 0.000000e+00 : f32
      %51 = vector.broadcast %cst_40 : f32 to vector<1x4x8x128xf32>
      %c0_41 = arith.constant 0 : index
      %c0_42 = arith.constant 0 : index
      %c0_43 = arith.constant 0 : index
      %c0_44 = arith.constant 0 : index
      %52 = vector.load %arg4[%c0_41, %c0_42, %c0_43, %c0_44] : memref<1x4x8x128xf32, #tpu.memory_space<vmem>>, vector<1x4x8x128xf32>
      tpu.vector_store %arg4[%c0_41, %c0_42, %c0_43, %c0_44], %51 {strides = array<i32>} : memref<1x4x8x128xf32, #tpu.memory_space<vmem>>, vector<1x4x8x128xf32>,
    } else {
    }
    %c0 = arith.constant 0 : index
    %c0_1 = arith.constant 0 : index
    %3 = vector.load %arg2[%c0, %c0_1] : memref<16x128xf32, #tpu.memory_space<vmem>>, vector<16x128xf32>
    %c0_2 = arith.constant 0 : index
    %c0_3 = arith.constant 0 : index
    %4 = vector.load %arg3[%c0_2, %c0_3] : memref<16x128xf32, #tpu.memory_space<vmem>>, vector<16x128xf32>
    %5 = math.log %3 : vector<16x128xf32>
    %cst = arith.constant -1.000000e+02 : f32
    %6 = vector.broadcast %cst : f32 to vector<16x128xf32>
    %7 = arith.maximumf %5, %6 : vector<16x128xf32>
    %cst_4 = arith.constant 1.000000e+00 : f32
    %8 = vector.broadcast %cst_4 : f32 to vector<16x128xf32>
    %9 = arith.subf %8, %3 : vector<16x128xf32>
    %10 = math.log %9 : vector<16x128xf32>
    %cst_5 = arith.constant -1.000000e+02 : f32
    %11 = vector.broadcast %cst_5 : f32 to vector<16x128xf32>
    %12 = arith.maximumf %10, %11 : vector<16x128xf32>
    %13 = arith.subf %7, %12 : vector<16x128xf32>
    %14 = arith.mulf %4, %13 : vector<16x128xf32>
    %15 = arith.addf %14, %12 : vector<16x128xf32>
    %cst_6 = arith.constant 0.000000e+00 : f32
    %16 = vector.broadcast %cst_6 : f32 to vector<16x128xf32>
    %17 = arith.subf %16, %15 : vector<16x128xf32>
    %c0_7 = arith.constant 0 : index
    %c0_8 = arith.constant 0 : index
    %c0_9 = arith.constant 0 : index
    %c0_10 = arith.constant 0 : index
    %18 = vector.load %arg4[%c0_7, %c0_8, %c0_9, %c0_10] : memref<1x4x8x128xf32, #tpu.memory_space<vmem>>, vector<1x1x8x128xf32>
    %19 = vector.shape_cast %18 : vector<1x1x8x128xf32> to vector<8x128xf32>
    %20 = vector.shape_cast %17 : vector<16x128xf32> to vector<2x8x128xf32>
    %cst_11 = arith.constant dense<0.000000e+00> : vector<8x128xf32>
    %21 = vector.multi_reduction <add>, %20, %cst_11 [0] : vector<2x8x128xf32> to vector<8x128xf32>
    %22 = arith.addf %19, %21 : vector<8x128xf32>
    %c0_12 = arith.constant 0 : index
    %c0_13 = arith.constant 0 : index
    %c0_14 = arith.constant 0 : index
    %c0_15 = arith.constant 0 : index
    %23 = vector.load %arg4[%c0_12, %c0_13, %c0_14, %c0_15] : memref<1x4x8x128xf32, #tpu.memory_space<vmem>>, vector<1x1x8x128xf32>
    %24 = vector.shape_cast %23 : vector<1x1x8x128xf32> to vector<8x128xf32>
    %25 = vector.shape_cast %22 : vector<8x128xf32> to vector<1x1x8x128xf32>
    tpu.vector_store %arg4[%c0_12, %c0_13, %c0_14, %c0_15], %25 {strides = array<i32>} : memref<1x4x8x128xf32, #tpu.memory_space<vmem>>, vector<1x1x8x128xf32>,
    %c0_16 = arith.constant 0 : index
    %c1 = arith.constant 1 : index
    %c0_17 = arith.constant 0 : index
    %c0_18 = arith.constant 0 : index
    %26 = vector.load %arg4[%c0_16, %c1, %c0_17, %c0_18] : memref<1x4x8x128xf32, #tpu.memory_space<vmem>>, vector<1x1x8x128xf32>
    %27 = vector.shape_cast %26 : vector<1x1x8x128xf32> to vector<8x128xf32>
    %28 = arith.mulf %3, %4 : vector<16x128xf32>
    %29 = vector.shape_cast %28 : vector<16x128xf32> to vector<2x8x128xf32>
    %cst_19 = arith.constant dense<0.000000e+00> : vector<8x128xf32>
    %30 = vector.multi_reduction <add>, %29, %cst_19 [0] : vector<2x8x128xf32> to vector<8x128xf32>
    %31 = arith.addf %27, %30 : vector<8x128xf32>
    %c0_20 = arith.constant 0 : index
    %c1_21 = arith.constant 1 : index
    %c0_22 = arith.constant 0 : index
    %c0_23 = arith.constant 0 : index
    %32 = vector.load %arg4[%c0_20, %c1_21, %c0_22, %c0_23] : memref<1x4x8x128xf32, #tpu.memory_space<vmem>>, vector<1x1x8x128xf32>
    %33 = vector.shape_cast %32 : vector<1x1x8x128xf32> to vector<8x128xf32>
    %34 = vector.shape_cast %31 : vector<8x128xf32> to vector<1x1x8x128xf32>
    tpu.vector_store %arg4[%c0_20, %c1_21, %c0_22, %c0_23], %34 {strides = array<i32>} : memref<1x4x8x128xf32, #tpu.memory_space<vmem>>, vector<1x1x8x128xf32>,
    %c0_24 = arith.constant 0 : index
    %c2 = arith.constant 2 : index
    %c0_25 = arith.constant 0 : index
    %c0_26 = arith.constant 0 : index
    %35 = vector.load %arg4[%c0_24, %c2, %c0_25, %c0_26] : memref<1x4x8x128xf32, #tpu.memory_space<vmem>>, vector<1x1x8x128xf32>
    %36 = vector.shape_cast %35 : vector<1x1x8x128xf32> to vector<8x128xf32>
    %37 = vector.shape_cast %3 : vector<16x128xf32> to vector<2x8x128xf32>
    %cst_27 = arith.constant dense<0.000000e+00> : vector<8x128xf32>
    %38 = vector.multi_reduction <add>, %37, %cst_27 [0] : vector<2x8x128xf32> to vector<8x128xf32>
    %39 = arith.addf %36, %38 : vector<8x128xf32>
    %c0_28 = arith.constant 0 : index
    %c2_29 = arith.constant 2 : index
    %c0_30 = arith.constant 0 : index
    %c0_31 = arith.constant 0 : index
    %40 = vector.load %arg4[%c0_28, %c2_29, %c0_30, %c0_31] : memref<1x4x8x128xf32, #tpu.memory_space<vmem>>, vector<1x1x8x128xf32>
    %41 = vector.shape_cast %40 : vector<1x1x8x128xf32> to vector<8x128xf32>
    %42 = vector.shape_cast %39 : vector<8x128xf32> to vector<1x1x8x128xf32>
    tpu.vector_store %arg4[%c0_28, %c2_29, %c0_30, %c0_31], %42 {strides = array<i32>} : memref<1x4x8x128xf32, #tpu.memory_space<vmem>>, vector<1x1x8x128xf32>,
    %c0_32 = arith.constant 0 : index
    %c3 = arith.constant 3 : index
    %c0_33 = arith.constant 0 : index
    %c0_34 = arith.constant 0 : index
    %43 = vector.load %arg4[%c0_32, %c3, %c0_33, %c0_34] : memref<1x4x8x128xf32, #tpu.memory_space<vmem>>, vector<1x1x8x128xf32>
    %44 = vector.shape_cast %43 : vector<1x1x8x128xf32> to vector<8x128xf32>
    %45 = vector.shape_cast %4 : vector<16x128xf32> to vector<2x8x128xf32>
    %cst_35 = arith.constant dense<0.000000e+00> : vector<8x128xf32>
    %46 = vector.multi_reduction <add>, %45, %cst_35 [0] : vector<2x8x128xf32> to vector<8x128xf32>
    %47 = arith.addf %44, %46 : vector<8x128xf32>
    %c0_36 = arith.constant 0 : index
    %c3_37 = arith.constant 3 : index
    %c0_38 = arith.constant 0 : index
    %c0_39 = arith.constant 0 : index
    %48 = vector.load %arg4[%c0_36, %c3_37, %c0_38, %c0_39] : memref<1x4x8x128xf32, #tpu.memory_space<vmem>>, vector<1x1x8x128xf32>
    %49 = vector.shape_cast %48 : vector<1x1x8x128xf32> to vector<8x128xf32>
    %50 = vector.shape_cast %47 : vector<8x128xf32> to vector<1x1x8x128xf32>
    tpu.vector_store %arg4[%c0_36, %c3_37, %c0_38, %c0_39], %50 {strides = array<i32>} : memref<1x4x8x128xf32, #tpu.memory_space<vmem>>, vector<1x1x8x128xf32>,
    return
  }
  func.func @transform_0(%arg0: i32, %arg1: i32) -> (i32, i32) {
    %c1_i32 = arith.constant 1 : i32
    %0 = arith.muli %arg0, %c1_i32 : i32
    %1 = arith.addi %0, %arg1 : i32
    %c0_i32 = arith.constant 0 : i32
    %c0_i32_0 = arith.constant 0 : i32
    return %1, %c0_i32 : i32, i32
  }
  func.func @transform_1(%arg0: i32, %arg1: i32) -> (i32, i32) {
    %c1_i32 = arith.constant 1 : i32
    %0 = arith.muli %arg0, %c1_i32 : i32
    %1 = arith.addi %0, %arg1 : i32
    %c0_i32 = arith.constant 0 : i32
    %c0_i32_0 = arith.constant 0 : i32
    return %1, %c0_i32 : i32, i32
  }
  func.func @transform_2(%arg0: i32, %arg1: i32) -> (i32, i32, i32, i32) {
    %c0_i32 = arith.constant 0 : i32
    %c0_i32_0 = arith.constant 0 : i32
    %c0_i32_1 = arith.constant 0 : i32
    %c0_i32_2 = arith.constant 0 : i32
    return %arg0, %c0_i32, %c0_i32_0, %c0_i32_1 : i32, i32, i32, i32
  }
}

</mosaic_0001>

<llo_original>
// kernel: tpu_custom_call.1
$region0: #{tpu_custom_call.1}
  #allocation0 [shape = 'u32[]', space=smem, size = 0x4, offset = 0x4, fixed_abs, tag = 'smem constant byte address 0x4 - core index']
  #allocation1 [shape = 'u32[72,128]{1,0:T(1,128)}', space=vmem, size = 0x9000, scoped, tag = 'internal scratch']
  %s0 = inlined_call_operand.hbm [shape: f32[16,128], index: 0, kind: input, shape index: {}]
  %s1 = inlined_call_operand.hbm [shape: f32[16,128], index: 1, kind: input, shape index: {}]
  %s2 = inlined_call_operand.hbm [shape: f32[1,4,8,128], index: 2, kind: output, shape index: {}]
  %s3 = sld [smem:[#allocation0]]
  $region30: #{tpu_custom_call.1} parent=0
    _
  %s5 = ssub.s32 1, %s3
  %s6 = scalar_select 0, %s5, %s3
  $region1: #{tpu_custom_call.1} parent=0
    #allocation2 [shape = 'u8[8192]{0}', space=vmem, size = 0x2000, scoped, tag = 'input window, operand 0, single buffered']
    #allocation3 [shape = 's32[1]{0}', space=sflag, size = 0x4, scoped, tag = 'scoped memory for tpu_custom_call.1']
    #allocation4 [shape = 's32[1]{0}', space=sflag, size = 0x4, scoped, tag = 'scoped memory for tpu_custom_call.1']
    #allocation5 [shape = 'u8[8192]{0}', space=vmem, size = 0x2000, scoped, tag = 'input window, operand 1, single buffered']
    #allocation6 [shape = 's32[1]{0}', space=sflag, size = 0x4, scoped, tag = 'scoped memory for tpu_custom_call.1']
    #allocation7 [shape = 'u8[16384]{0}', space=vmem, size = 0x4000, scoped, tag = 'output window, operand 0, single buffered']
    %7 = vsyncpa [#allocation3], 0
    %8 = vsyncpa [#allocation6], 0
    %9 = vsyncpa [#allocation4], 0
    // Predicated region
    $region2: #{tpu_custom_call.1} parent=1 // pred_check
      _
    $region3: #{tpu_custom_call.1} parent=1 // pred_check_branch
      %11 = sbr.rel (0) target = $region5
    $region4: #{tpu_custom_call.1} parent=1 // pred_region
      %s12 = sadd.s32 0, 0
      %s13 = smul.u32 2, %s12
      %15 = vsyncadd [#allocation3], 0
      %s16 = smul.addr %s13, 8
      %s17 = scalar_lea.hbm %s0, %s16
      %s18 = sshll.u32 %s17, 4
      %s19 = int_to_ptr.hbm [resolvable:$true] %s18
      %s20 = sshll.u32 [#allocation2], 4
      %s21 = int_to_ptr.vmem [resolvable:$true] %s20
      %26 = dma.hbm_to_vmem [thread:$0]  %s19, 256, %s21, [#allocation3], 128, 128, 8
    $region5: #{tpu_custom_call.1} parent=1 // pred_fallthru
      _
    // Predicated region
    $region6: #{tpu_custom_call.1} parent=1 // pred_check
      _
    $region7: #{tpu_custom_call.1} parent=1 // pred_check_branch
      %28 = sbr.rel (0) target = $region9
    $region8: #{tpu_custom_call.1} parent=1 // pred_region
      %s29 = sadd.s32 0, 0
      %s30 = smul.u32 2, %s29
      %32 = vsyncadd [#allocation6], 0
      %s33 = smul.addr %s30, 8
      %s34 = scalar_lea.hbm %s1, %s33
      %s35 = sshll.u32 %s34, 4
      %s36 = int_to_ptr.hbm [resolvable:$true] %s35
      %s37 = sshll.u32 [#allocation5], 4
      %s38 = int_to_ptr.vmem [resolvable:$true] %s37
      %43 = dma.hbm_to_vmem [thread:$0]  %s36, 256, %s38, [#allocation6], 128, 128, 8
    $region9: #{tpu_custom_call.1} parent=1 // pred_fallthru
      _
    // Predicated region
    $region10: #{tpu_custom_call.1} parent=1 // pred_check
      _
    $region11: #{tpu_custom_call.1} parent=1 // pred_check_branch
      %45 = sbr.rel (0) target = $region13
    $region12: #{tpu_custom_call.1} parent=1 // pred_region
      %47 = dma.done [#allocation3], 256
    $region13: #{tpu_custom_call.1} parent=1 // pred_fallthru
      _
    // Predicated region
    $region14: #{tpu_custom_call.1} parent=1 // pred_check
      _
    $region15: #{tpu_custom_call.1} parent=1 // pred_check_branch
      %49 = sbr.rel (0) target = $region17
    $region16: #{tpu_custom_call.1} parent=1 // pred_region
      %51 = dma.done [#allocation6], 256
    $region17: #{tpu_custom_call.1} parent=1 // pred_fallthru
      _
    %s52 = sadd.s32 0, 0
    %s53 = smul.u32 2, %s52
    %s54 = sadd.s32 0, 0
    %s55 = smul.u32 2, %s54
    %p56 = scmp.eq.s32.totalorder 0, 0
    // Predicated region
    $region18: #{tpu_custom_call.1} parent=1 // pred_check
      %p57 = pneg %p56
    $region19: #{tpu_custom_call.1} parent=1 // pred_check_branch
      %59 = sbr.rel (%p57) target = $region21
    $region20: #{tpu_custom_call.1} parent=1 // pred_region
      %60 = vst [vmem:[#allocation7] sm:$0xff] 0.0
      %61 = vst [vmem:[#allocation7 + $0x8] sm:$0xff] 0.0
      %62 = vst [vmem:[#allocation7 + $0x10] sm:$0xff] 0.0
      %63 = vst [vmem:[#allocation7 + $0x18] sm:$0xff] 0.0
    $region21: #{tpu_custom_call.1} parent=1 // pred_fallthru
      _
    %v64 = vld [vmem:[#allocation2] sm:$0xff]
    %v65 = vld [vmem:[#allocation2 + $0x8] sm:$0xff]
    %v66 = vld [vmem:[#allocation5] sm:$0xff]
    %v67 = vld [vmem:[#allocation5 + $0x8] sm:$0xff]
    %v68 = vlog2.pop %v64
    %v69 = vmul.f32 %v68, 0.6931472
    %v70 = vlog2.pop %v65
    %v71 = vmul.f32 %v70, 0.6931472
    %v72 = vmax.f32 %v69, -100.0
    %v73 = vmax.f32 %v71, -100.0
    %v74 = vsub.f32 1.0, %v64
    %v75 = vsub.f32 1.0, %v65
    %v76 = vlog2.pop %v74
    %v77 = vmul.f32 %v76, 0.6931472
    %v78 = vlog2.pop %v75
    %v79 = vmul.f32 %v78, 0.6931472
    %v80 = vmax.f32 %v77, -100.0
    %v81 = vmax.f32 %v79, -100.0
    %v82 = vsub.f32 %v72, %v80
    %v83 = vsub.f32 %v73, %v81
    %v84 = vmul.f32 %v66, %v82
    %v85 = vmul.f32 %v67, %v83
    %v86 = vadd.f32 %v84, %v80
    %v87 = vadd.f32 %v85, %v81
    %v88 = vsub.f32 0.0, %v86
    %v89 = vsub.f32 0.0, %v87
    %v90 = vld [vmem:[#allocation7] sm:$0xff]
    %v91 = vadd.f32 %v88, %v89
    %v92 = vadd.f32 %v90, %v91
    %93 = vst [vmem:[#allocation7] sm:$0xff] %v92
    %s94 = scalar_lea.vmem [#allocation7], 8
    %v95 = vld [vmem:[%s94] sm:$0xff]
    %v96 = vmul.f32 %v64, %v66
    %v97 = vmul.f32 %v65, %v67
    %v98 = vadd.f32 %v96, %v97
    %v99 = vadd.f32 %v95, %v98
    %100 = vst [vmem:[%s94] sm:$0xff] %v99
    %s101 = scalar_lea.vmem [#allocation7], 16
    %v102 = vld [vmem:[%s101] sm:$0xff]
    %v103 = vadd.f32 %v64, %v65
    %v104 = vadd.f32 %v102, %v103
    %105 = vst [vmem:[%s101] sm:$0xff] %v104
    %s106 = scalar_lea.vmem [#allocation7], 24
    %v107 = vld [vmem:[%s106] sm:$0xff]
    %v108 = vadd.f32 %v66, %v67
    %v109 = vadd.f32 %v107, %v108
    %110 = vst [vmem:[%s106] sm:$0xff] %v109
    // Predicated region
    $region22: #{tpu_custom_call.1} parent=1 // pred_check
      _
    $region23: #{tpu_custom_call.1} parent=1 // pred_check_branch
      %112 = sbr.rel (0) target = $region25
    $region24: #{tpu_custom_call.1} parent=1 // pred_region
      %114 = vsyncadd [#allocation4], 0
      %s115 = sshll.u32 [#allocation7], 4
      %s116 = int_to_ptr.vmem [resolvable:$true] %s115
      %s117 = sshll.u32 %s2, 4
      %s118 = int_to_ptr.hbm [resolvable:$true] %s117
      %123 = dma.vmem_to_hbm [thread:$0]  %s116, 512, %s118, [#allocation4], 128, 128, 8
    $region25: #{tpu_custom_call.1} parent=1 // pred_fallthru
      _
    // Predicated region
    $region26: #{tpu_custom_call.1} parent=1 // pred_check
      _
    $region27: #{tpu_custom_call.1} parent=1 // pred_check_branch
      %125 = sbr.rel (0) target = $region29
    $region28: #{tpu_custom_call.1} parent=1 // pred_region
      %127 = dma.done [#allocation4], 512
    $region29: #{tpu_custom_call.1} parent=1 // pred_fallthru
      _
    %128 = vsyncpa [#allocation3], 1
    %129 = vsyncpa [#allocation6], 1
    %130 = vsyncpa [#allocation4], 1

</llo_original>
